<compile_context>
chip_gen: v7x
topology: tpu7x:2x2x1
jax: 0.10.0
libtpu: 0.0.40
codegen_flags: <defaults>
</compile_context>

<pallas_src>
import jax
import jax.numpy as jnp
from jax.experimental import pallas as pl
from jax.experimental.pallas import tpu as pltpu

OUT_PAD = 128  # lane-dense output width (multiple of 128)


def mlp_kernel(x_ref, w1_ref, b1_ref, w2_ref, b2_ref, o_ref):
    # x arrives as f32 (no wrapper pre-cast -> no extra HBM pass over x); the bf16 cast is
    # a free VPU op, and the MXU accumulates in f32. Bias + ReLU in f32.
    x = x_ref[...].astype(jnp.bfloat16)
    h = jnp.dot(x, w1_ref[...], preferred_element_type=jnp.float32)
    h = jnp.maximum(h + b1_ref[...], 0.0)
    # Layer 2: N already padded to 128 -> one clean MXU pass and unmasked lane-dense stores.
    out = jnp.dot(h.astype(jnp.bfloat16), w2_ref[...],
                  preferred_element_type=jnp.float32)
    o_ref[...] = (out + b2_ref[...]).astype(o_ref.dtype)


def _round_up(x, m):
    return ((x + m - 1) // m) * m


def _default_batch_tile():
    # v5e: smaller tile (closer to compute/BW balance, smaller scoped-VMEM headroom).
    # v6e/v7x: larger tile to amortize the ~0.35us per-grid-step overhead.
    try:
        kind = jax.devices()[0].device_kind.lower()
    except Exception:
        return 1024
    if "v5 lite" in kind or "v5e" in kind or "v5lite" in kind:
        return 1024
    return 2048


def prepare_params(w1, b1, w2, b2):
    """One-time parameter prep, hoisted out of the per-call path.

    w1 -> bf16; w2/b2 zero-padded to OUT_PAD columns (lane-dense layer-2 output)."""
    in_dim, hid = w1.shape
    out_dim = w2.shape[1]
    w2_pad = jnp.zeros((hid, OUT_PAD), jnp.bfloat16).at[:, :out_dim].set(
        jnp.asarray(w2, jnp.bfloat16))
    b2_pad = jnp.zeros((1, OUT_PAD), jnp.float32).at[:, :out_dim].set(
        jnp.asarray(b2, jnp.float32).reshape(1, out_dim))
    return {
        "w1": jnp.asarray(w1, jnp.bfloat16),
        "b1": jnp.asarray(b1, jnp.float32).reshape(1, hid),
        "w2": w2_pad,
        "b2": b2_pad,
    }


def mlp_forward(x, params, *, out_dim=10, tb=None):
    """x: (B, C, H, W) f32; params from prepare_params(). Returns (B, out_dim) f32.
    Same math as torch Flatten -> Linear(784,256) -> ReLU -> Linear(256,10)."""
    w1, b1, w2, b2 = params["w1"], params["b1"], params["w2"], params["b2"]
    in_dim, hid = w1.shape
    B = x.shape[0]
    x_flat = x.reshape(B, -1).astype(jnp.float32)   # torch.nn.Flatten semantics
    assert x_flat.shape[1] == in_dim

    if tb is None:
        tb = _default_batch_tile()
    # >=2 grid tiles whenever B allows it (both v7x TensorCores get work); multiple of 16
    # keeps the f32 x block and the bf16 output block tile-aligned for any B.
    TB = max(16, min(tb, _round_up(pl.cdiv(B, 2), 16)))
    # Ragged last block is masked by Pallas (OOB rows never stored) -> no jnp.pad copy of x.
    grid = (pl.cdiv(B, TB),)

    flops = 2 * B * (in_dim * hid + hid * OUT_PAD)
    bytes_accessed = (x_flat.size * 4 + w1.size * 2 + w2.size * 2
                      + b1.size * 4 + b2.size * 4 + B * OUT_PAD * 2)

    # VMEM budget: double-buffered f32 x tile + bf16 out tile + (double-buffered) weights.
    vmem_bytes = (2 * TB * in_dim * 4            # x blocks (f32)
                  + 2 * TB * OUT_PAD * 2         # out blocks (bf16)
                  + 2 * (in_dim * hid * 2 + hid * OUT_PAD * 2)   # w1, w2 (bf16)
                  + 2 * (8 * hid * 4 + 8 * OUT_PAD * 4))         # biases (padded rows)
    vmem_limit = int(min(vmem_bytes + (8 << 20), 56 << 20))  # stay under v7x's 64 MiB cap

    out = pl.pallas_call(
        mlp_kernel,
        out_shape=jax.ShapeDtypeStruct((B, OUT_PAD), jnp.bfloat16),
        grid_spec=pltpu.PrefetchScalarGridSpec(
            num_scalar_prefetch=0,
            grid=grid,
            in_specs=[
                pl.BlockSpec((TB, in_dim), lambda i: (i, 0)),    # batch-tiled f32 x
                pl.BlockSpec((in_dim, hid), lambda i: (0, 0)),   # weights stay VMEM-resident
                pl.BlockSpec((1, hid), lambda i: (0, 0)),
                pl.BlockSpec((hid, OUT_PAD), lambda i: (0, 0)),
                pl.BlockSpec((1, OUT_PAD), lambda i: (0, 0)),
            ],
            out_specs=pl.BlockSpec((TB, OUT_PAD), lambda i: (i, 0)),
        ),
        compiler_params=pltpu.CompilerParams(
            dimension_semantics=("parallel",),   # batch axis splits across v7x's two TCs
            vmem_limit_bytes=vmem_limit,
        ),
        cost_estimate=pl.CostEstimate(
            flops=flops, transcendentals=0, bytes_accessed=int(bytes_accessed)),
    )(x_flat, w1, b1, w2, b2)

    # Only the first out_dim lanes are real. Consumers that can work with the padded
    # (B, OUT_PAD) bf16 buffer should take `out` directly; under jit this slice is a
    # tiny fused epilogue (B x out_dim), not a full re-read of the padded buffer.
    return out[:, :out_dim].astype(jnp.float32)


if __name__ == "__main__":
    key = jax.random.PRNGKey(0)
    k_x, k_w1, k_b1, k_w2, k_b2 = jax.random.split(key, 5)

    B, C, H, W = 2, 1, 28, 28          # MNIST-style input implied by Linear(28*28, 256)
    IN, HID, OUT = C * H * W, 256, 10

    x = jax.random.normal(k_x, (B, C, H, W), dtype=jnp.float32)
    # Deterministic synthetic parameters (shapes match nn.Linear(784,256), nn.Linear(256,10))
    w1 = jax.random.normal(k_w1, (IN, HID), dtype=jnp.float32) * 0.02
    b1 = jax.random.normal(k_b1, (HID,), dtype=jnp.float32) * 0.02
    w2 = jax.random.normal(k_w2, (HID, OUT), dtype=jnp.float32) * 0.02
    b2 = jax.random.normal(k_b2, (OUT,), dtype=jnp.float32) * 0.02

    params = prepare_params(w1, b1, w2, b2)   # one-time prep, hoisted out of the fwd path
    fwd = jax.jit(mlp_forward)                # flatten + pallas_call + slice in one program
    out = fwd(x, params)
    jax.block_until_ready(out)
    assert out.shape == (B, OUT)

    x_flat = x.reshape(B, -1)

    # Tight check vs a reference using the same bf16-input / f32-accumulate math.
    h_ref = jnp.maximum(
        jnp.dot(x_flat.astype(jnp.bfloat16), w1.astype(jnp.bfloat16),
                preferred_element_type=jnp.float32) + b1[None, :], 0.0)
    ref_bf16 = jnp.dot(h_ref.astype(jnp.bfloat16), w2.astype(jnp.bfloat16),
                       preferred_element_type=jnp.float32) + b2[None, :]
    assert jnp.allclose(out, ref_bf16, atol=5e-3, rtol=5e-3)

    # Loose check vs the full-f32 PyTorch-equivalent reference (bf16 rounding tolerance).
    ref_f32 = jnp.maximum(x_flat @ w1 + b1[None, :], 0.0) @ w2 + b2[None, :]
    assert jnp.allclose(out, ref_f32, atol=3e-2, rtol=3e-2)

    print("KERNEL_OK")
</pallas_src>

<mosaic_0001>
module attributes {stable_mosaic.version = 11 : i64} {
  func.func @mlp_kernel(%arg0: i32, %arg1: memref<16x784xf32, #tpu.memory_space<vmem>>, %arg2: memref<784x256xbf16, #tpu.memory_space<vmem>>, %arg3: memref<1x256xf32, #tpu.memory_space<vmem>>, %arg4: memref<256x128xbf16, #tpu.memory_space<vmem>>, %arg5: memref<1x128xf32, #tpu.memory_space<vmem>>, %arg6: memref<16x128xbf16, #tpu.memory_space<vmem>>) attributes {dimension_semantics = [#tpu.dimension_semantics<parallel>], iteration_bounds = array<i64: 1>, scalar_prefetch = 0 : i64, scratch_operands = 0 : i64, tpu.core_type = #tpu.core_type<tc>, window_params = [{transform_indices = @transform_0, window_bounds = array<i64: 16, 784>}, {pipeline_mode = #tpu.pipeline_mode<synchronous>, transform_indices = @transform_1, window_bounds = array<i64: 784, 256>}, {pipeline_mode = #tpu.pipeline_mode<synchronous>, transform_indices = @transform_2, window_bounds = array<i64: 1, 256>}, {pipeline_mode = #tpu.pipeline_mode<synchronous>, transform_indices = @transform_3, window_bounds = array<i64: 256, 128>}, {pipeline_mode = #tpu.pipeline_mode<synchronous>, transform_indices = @transform_4, window_bounds = array<i64: 1, 128>}, {transform_indices = @transform_5, window_bounds = array<i64: 16, 128>}]} {
    %c0 = arith.constant 0 : index
    %c0_0 = arith.constant 0 : index
    %0 = vector.load %arg1[%c0, %c0_0] : memref<16x784xf32, #tpu.memory_space<vmem>>, vector<16x784xf32>
    %1 = arith.truncf %0 : vector<16x784xf32> to vector<16x784xbf16>
    %c0_1 = arith.constant 0 : index
    %c0_2 = arith.constant 0 : index
    %2 = vector.load %arg2[%c0_1, %c0_2] : memref<784x256xbf16, #tpu.memory_space<vmem>>, vector<784x256xbf16>
    %cst = arith.constant dense<0.000000e+00> : vector<16x256xf32>
    %3 = tpu.matmul %1, %2, %cst {dimension_numbers = #tpu.dot_dimension_numbers<[1], [0], [0], [1], [0, 0, 1, 1], [], []>} : vector<16x784xbf16>, vector<784x256xbf16>, vector<16x256xf32> -> vector<16x256xf32>
    %c0_3 = arith.constant 0 : index
    %c0_4 = arith.constant 0 : index
    %4 = vector.load %arg3[%c0_3, %c0_4] : memref<1x256xf32, #tpu.memory_space<vmem>>, vector<1x256xf32>
    %5 = vector.broadcast %4 : vector<1x256xf32> to vector<16x256xf32>
    %6 = arith.addf %3, %5 : vector<16x256xf32>
    %cst_5 = arith.constant 0.000000e+00 : f32
    %7 = vector.broadcast %cst_5 : f32 to vector<16x256xf32>
    %8 = arith.maximumf %6, %7 : vector<16x256xf32>
    %9 = arith.truncf %8 : vector<16x256xf32> to vector<16x256xbf16>
    %c0_6 = arith.constant 0 : index
    %c0_7 = arith.constant 0 : index
    %10 = vector.load %arg4[%c0_6, %c0_7] : memref<256x128xbf16, #tpu.memory_space<vmem>>, vector<256x128xbf16>
    %cst_8 = arith.constant dense<0.000000e+00> : vector<16x128xf32>
    %11 = tpu.matmul %9, %10, %cst_8 {dimension_numbers = #tpu.dot_dimension_numbers<[1], [0], [0], [1], [0, 0, 1, 1], [], []>} : vector<16x256xbf16>, vector<256x128xbf16>, vector<16x128xf32> -> vector<16x128xf32>
    %c0_9 = arith.constant 0 : index
    %c0_10 = arith.constant 0 : index
    %12 = vector.load %arg5[%c0_9, %c0_10] : memref<1x128xf32, #tpu.memory_space<vmem>>, vector<1x128xf32>
    %13 = vector.broadcast %12 : vector<1x128xf32> to vector<16x128xf32>
    %14 = arith.addf %11, %13 : vector<16x128xf32>
    %15 = arith.truncf %14 : vector<16x128xf32> to vector<16x128xbf16>
    %c0_11 = arith.constant 0 : index
    %c0_12 = arith.constant 0 : index
    %16 = vector.load %arg6[%c0_11, %c0_12] : memref<16x128xbf16, #tpu.memory_space<vmem>>, vector<16x128xbf16>
    tpu.vector_store %arg6[%c0_11, %c0_12], %15 {strides = array<i32>} : memref<16x128xbf16, #tpu.memory_space<vmem>>, vector<16x128xbf16>,
    return
  }
  func.func @transform_0(%arg0: i32) -> (i32, i32) {
    %c0_i32 = arith.constant 0 : i32
    %c0_i32_0 = arith.constant 0 : i32
    return %arg0, %c0_i32 : i32, i32
  }
  func.func @transform_1(%arg0: i32) -> (i32, i32) {
    %c0_i32 = arith.constant 0 : i32
    %c0_i32_0 = arith.constant 0 : i32
    %c0_i32_1 = arith.constant 0 : i32
    return %c0_i32, %c0_i32_0 : i32, i32
  }
  func.func @transform_2(%arg0: i32) -> (i32, i32) {
    %c0_i32 = arith.constant 0 : i32
    %c0_i32_0 = arith.constant 0 : i32
    %c0_i32_1 = arith.constant 0 : i32
    return %c0_i32, %c0_i32_0 : i32, i32
  }
  func.func @transform_3(%arg0: i32) -> (i32, i32) {
    %c0_i32 = arith.constant 0 : i32
    %c0_i32_0 = arith.constant 0 : i32
    %c0_i32_1 = arith.constant 0 : i32
    return %c0_i32, %c0_i32_0 : i32, i32
  }
  func.func @transform_4(%arg0: i32) -> (i32, i32) {
    %c0_i32 = arith.constant 0 : i32
    %c0_i32_0 = arith.constant 0 : i32
    %c0_i32_1 = arith.constant 0 : i32
    return %c0_i32, %c0_i32_0 : i32, i32
  }
  func.func @transform_5(%arg0: i32) -> (i32, i32) {
    %c0_i32 = arith.constant 0 : i32
    %c0_i32_0 = arith.constant 0 : i32
    return %arg0, %c0_i32 : i32, i32
  }
}

</mosaic_0001>

<llo_original>
// kernel: mlp_forward.1
$region0: #{mlp_forward.1}
  #allocation0 [shape = 'u32[]', space=smem, size = 0x4, offset = 0x4, fixed_abs, tag = 'smem constant byte address 0x4 - core index']
  #allocation1 [shape = 'u32[144,128]{1,0:T(1,128)}', space=vmem, size = 0x12000, scoped, tag = 'internal scratch']
  %s0 = inlined_call_operand.vmem [shape: f32[2,784], index: 0, kind: input, shape index: {}]
  %s1 = inlined_call_operand.hbm [shape: bf16[784,256], index: 1, kind: input, shape index: {}]
  %s2 = inlined_call_operand.vmem [shape: f32[1,256], index: 2, kind: input, shape index: {}]
  %s3 = inlined_call_operand.vmem [shape: bf16[256,128], index: 3, kind: input, shape index: {}]
  %s4 = inlined_call_operand.vmem [shape: f32[1,128], index: 4, kind: input, shape index: {}]
  %s5 = inlined_call_operand.vmem [shape: bf16[2,128], index: 5, kind: output, shape index: {}]
  %s6 = sld [smem:[#allocation0]]
  $region64: #{mlp_forward.1} parent=0
    _
  %s8 = ssub.s32 1, %s6
  %s9 = scalar_select 0, %s8, %s6
  $region1: #{mlp_forward.1} parent=0
    #allocation2 [shape = 'u8[401408]{0}', space=vmem, size = 0x62000, scoped, tag = 'input window, operand 1, single buffered']
    #allocation3 [shape = 's32[1]{0}', space=sflag, size = 0x4, scoped, tag = 'scoped memory for mlp_forward.1']
    #allocation4 [shape = 'u8[4096]{0}', space=vmem, size = 0x1000, scoped, tag = 'output window, operand 0, single buffered']
    %10 = vsyncpa [#allocation3], 0
    // Predicated region
    $region2: #{mlp_forward.1} parent=1 // pred_check
      _
    $region3: #{mlp_forward.1} parent=1 // pred_check_branch
      %12 = sbr.rel (0) target = $region5
    $region4: #{mlp_forward.1} parent=1 // pred_region
      _
    $region5: #{mlp_forward.1} parent=1 // pred_fallthru
      _
    // Predicated region
    $region6: #{mlp_forward.1} parent=1 // pred_check
      _
    $region7: #{mlp_forward.1} parent=1 // pred_check_branch
      %14 = sbr.rel (0) target = $region9
    $region8: #{mlp_forward.1} parent=1 // pred_region
      %s16 = ssub.s32 12544, 12544
      %17 = vsyncadd [#allocation3], %s16
      %s18 = sshll.u32 [#allocation2], 4
      %s19 = int_to_ptr.vmem [resolvable:$true] %s18
      %24 = dma.hbm_to_vmem [thread:$0]  %s1, 12544, %s19, [#allocation3], 128, 128, 8
    $region9: #{mlp_forward.1} parent=1 // pred_fallthru
      _
    // Predicated region
    $region10: #{mlp_forward.1} parent=1 // pred_check
      _
    $region11: #{mlp_forward.1} parent=1 // pred_check_branch
      %26 = sbr.rel (0) target = $region13
    $region12: #{mlp_forward.1} parent=1 // pred_region
      _
    $region13: #{mlp_forward.1} parent=1 // pred_fallthru
      _
    // Predicated region
    $region14: #{mlp_forward.1} parent=1 // pred_check
      _
    $region15: #{mlp_forward.1} parent=1 // pred_check_branch
      %28 = sbr.rel (0) target = $region17
    $region16: #{mlp_forward.1} parent=1 // pred_region
      _
    $region17: #{mlp_forward.1} parent=1 // pred_fallthru
      _
    // Predicated region
    $region18: #{mlp_forward.1} parent=1 // pred_check
      _
    $region19: #{mlp_forward.1} parent=1 // pred_check_branch
      %30 = sbr.rel (0) target = $region21
    $region20: #{mlp_forward.1} parent=1 // pred_region
      _
    $region21: #{mlp_forward.1} parent=1 // pred_fallthru
      _
    // Predicated region
    $region22: #{mlp_forward.1} parent=1 // pred_check
      _
    $region23: #{mlp_forward.1} parent=1 // pred_check_branch
      %32 = sbr.rel (0) target = $region25
    $region24: #{mlp_forward.1} parent=1 // pred_region
      %33 = dma.done [#allocation3], 12544
    $region25: #{mlp_forward.1} parent=1 // pred_fallthru
      _
    %v35 = vld [vmem:[%s0] sm:$0xff]
    %v36 = vld [vmem:[%s0 + $0x8] sm:$0x3f]
    %v37 = vld [vmem:[%s0 + $0xe] sm:$0xff]
    %v38 = vld [vmem:[%s0 + $0x16] sm:$0x3f]
    %v39 = vld [vmem:[%s0 + $0x1c] sm:$0xff]
    %v40 = vld [vmem:[%s0 + $0x24] sm:$0x3f]
    %v41 = vld [vmem:[%s0 + $0x2a] sm:$0xff]
    %v42 = vld [vmem:[%s0 + $0x32] sm:$0x3f]
    %v43 = vld [vmem:[%s0 + $0x38] sm:$0xff]
    %v44 = vld [vmem:[%s0 + $0x40] sm:$0x3f]
    %v45 = vld [vmem:[%s0 + $0x46] sm:$0xff]
    %v46 = vld [vmem:[%s0 + $0x4e] sm:$0x3f]
    %v47 = vld [vmem:[%s0 + $0x54] sm:$0xff]
    %v48 = vld [vmem:[%s0 + $0x5c] sm:$0x3f]
    %v49 = vld [vmem:[%s0 + $0x62] sm:$0xff]
    %v50 = vld [vmem:[%s0 + $0x6a] sm:$0x3f]
    %v67 = vcombine.low %v35, %v37
    %v68 = vcombine.high %v35, %v37
    %v69 = vcombine.low %v39, %v41
    %v70 = vcombine.high %v39, %v41
    %v72 = vunpack.c.l.s4 1983009808
    %v73 = vunpack.c.0.s8 %v72
    %v74 = vlaneseq
    %v75 = vshrl.u32 %v74, 7
    %v76 = vsub.s32 %v73, %v75
    %v77 = vrot.slane %v67, %v76
    %v79 = vunpack.c.l.s4 1983009808
    %v80 = vunpack.c.0.s8 %v79
    %v81 = vlaneseq
    %v82 = vshrl.u32 %v81, 7
    %v83 = vsub.s32 %v80, %v82
    %v84 = vrot.slane %v68, %v83
    %v86 = vunpack.c.l.s4 1983009808
    %v87 = vunpack.c.0.s8 %v86
    %v88 = vlaneseq
    %v89 = vshrl.u32 %v88, 7
    %v90 = vsub.s32 %v87, %v89
    %v91 = vrot.slane %v69, %v90
    %v93 = vunpack.c.l.s4 1983009808
    %v94 = vunpack.c.0.s8 %v93
    %v95 = vlaneseq
    %v96 = vshrl.u32 %v95, 7
    %v97 = vsub.s32 %v94, %v96
    %v98 = vrot.slane %v70, %v97
    %v99 = vcombine.low %v77, %v91
    %v100 = vcombine.high %v77, %v91
    %v101 = vcombine.low %v84, %v98
    %v102 = vcombine.high %v84, %v98
    %v103 = vcombine.low %v36, %v38
    %v104 = vcombine.high %v36, %v38
    %v105 = vcombine.low %v40, %v42
    %v106 = vcombine.high %v40, %v42
    %v108 = vunpack.c.l.s4 1983009808
    %v109 = vunpack.c.0.s8 %v108
    %v110 = vlaneseq
    %v111 = vshrl.u32 %v110, 7
    %v112 = vsub.s32 %v109, %v111
    %v113 = vrot.slane %v103, %v112
    %v115 = vunpack.c.l.s4 1983009808
    %v116 = vunpack.c.0.s8 %v115
    %v117 = vlaneseq
    %v118 = vshrl.u32 %v117, 7
    %v119 = vsub.s32 %v116, %v118
    %v120 = vrot.slane %v104, %v119
    %v122 = vunpack.c.l.s4 1983009808
    %v123 = vunpack.c.0.s8 %v122
    %v124 = vlaneseq
    %v125 = vshrl.u32 %v124, 7
    %v126 = vsub.s32 %v123, %v125
    %v127 = vrot.slane %v105, %v126
    %v129 = vunpack.c.l.s4 1983009808
    %v130 = vunpack.c.0.s8 %v129
    %v131 = vlaneseq
    %v132 = vshrl.u32 %v131, 7
    %v133 = vsub.s32 %v130, %v132
    %v134 = vrot.slane %v106, %v133
    %v135 = vcombine.low %v113, %v127
    %v136 = vcombine.high %v113, %v127
    %v137 = vcombine.low %v120, %v134
    %v138 = vcombine.low %v43, %v45
    %v139 = vcombine.high %v43, %v45
    %v140 = vcombine.low %v47, %v49
    %v141 = vcombine.high %v47, %v49
    %v143 = vunpack.c.l.s4 1983009808
    %v144 = vunpack.c.0.s8 %v143
    %v145 = vlaneseq
    %v146 = vshrl.u32 %v145, 7
    %v147 = vsub.s32 %v144, %v146
    %v148 = vrot.slane %v138, %v147
    %v150 = vunpack.c.l.s4 1983009808
    %v151 = vunpack.c.0.s8 %v150
    %v152 = vlaneseq
    %v153 = vshrl.u32 %v152, 7
    %v154 = vsub.s32 %v151, %v153
    %v155 = vrot.slane %v139, %v154
    %v157 = vunpack.c.l.s4 1983009808
    %v158 = vunpack.c.0.s8 %v157
    %v159 = vlaneseq
    %v160 = vshrl.u32 %v159, 7
    %v161 = vsub.s32 %v158, %v160
    %v162 = vrot.slane %v140, %v161
    %v164 = vunpack.c.l.s4 1983009808
    %v165 = vunpack.c.0.s8 %v164
    %v166 = vlaneseq
    %v167 = vshrl.u32 %v166, 7
    %v168 = vsub.s32 %v165, %v167
    %v169 = vrot.slane %v141, %v168
    %v170 = vcombine.low %v148, %v162
    %v171 = vcombine.high %v148, %v162
    %v172 = vcombine.low %v155, %v169
    %v173 = vcombine.high %v155, %v169
    %v174 = vcombine.low %v44, %v46
    %v175 = vcombine.high %v44, %v46
    %v176 = vcombine.low %v48, %v50
    %v177 = vcombine.high %v48, %v50
    %v179 = vunpack.c.l.s4 1983009808
    %v180 = vunpack.c.0.s8 %v179
    %v181 = vlaneseq
    %v182 = vshrl.u32 %v181, 7
    %v183 = vsub.s32 %v180, %v182
    %v184 = vrot.slane %v174, %v183
    %v186 = vunpack.c.l.s4 1983009808
    %v187 = vunpack.c.0.s8 %v186
    %v188 = vlaneseq
    %v189 = vshrl.u32 %v188, 7
    %v190 = vsub.s32 %v187, %v189
    %v191 = vrot.slane %v175, %v190
    %v193 = vunpack.c.l.s4 1983009808
    %v194 = vunpack.c.0.s8 %v193
    %v195 = vlaneseq
    %v196 = vshrl.u32 %v195, 7
    %v197 = vsub.s32 %v194, %v196
    %v198 = vrot.slane %v176, %v197
    %v200 = vunpack.c.l.s4 1983009808
    %v201 = vunpack.c.0.s8 %v200
    %v202 = vlaneseq
    %v203 = vshrl.u32 %v202, 7
    %v204 = vsub.s32 %v201, %v203
    %v205 = vrot.slane %v177, %v204
    %v206 = vcombine.low %v184, %v198
    %v207 = vcombine.high %v184, %v198
    %v208 = vcombine.low %v191, %v205
    %v223 = vpack.c.bf16 %v170, %v99
    %v224 = vpack.c.bf16 %v171, %v100
    %v225 = vpack.c.bf16 %v172, %v101
    %v226 = vpack.c.bf16 %v173, %v102
    %v227 = vpack.c.bf16 %v206, %v135
    %v228 = vpack.c.bf16 %v207, %v136
    %v229 = vpack.c.bf16 %v208, %v137
    %v230 = vld [vmem:[#allocation2] sm:$0xff]
    %v231 = vld [vmem:[#allocation2 + $0x8] sm:$0xff]
    %v232 = vld [vmem:[#allocation2 + $0x10] sm:$0xff]
    %v233 = vld [vmem:[#allocation2 + $0x18] sm:$0xff]
    %v234 = vld [vmem:[#allocation2 + $0x20] sm:$0xff]
    %v235 = vld [vmem:[#allocation2 + $0x28] sm:$0xff]
    %v236 = vld [vmem:[#allocation2 + $0x30] sm:$0xff]
    %v237 = vld [vmem:[#allocation2 + $0x38] sm:$0xff]
    %v238 = vld [vmem:[#allocation2 + $0x40] sm:$0xff]
    %v239 = vld [vmem:[#allocation2 + $0x48] sm:$0xff]
    %v240 = vld [vmem:[#allocation2 + $0x50] sm:$0xff]
    %v241 = vld [vmem:[#allocation2 + $0x58] sm:$0xff]
    %v242 = vld [vmem:[#allocation2 + $0x60] sm:$0xff]
    %v243 = vld [vmem:[#allocation2 + $0x68] sm:$0xff]
    %v244 = vld [vmem:[#allocation2 + $0x70] sm:$0xff]
    %v245 = vld [vmem:[#allocation2 + $0x78] sm:$0xff]
    %v246 = vld [vmem:[#allocation2 + $0x80] sm:$0xff]
    %v247 = vld [vmem:[#allocation2 + $0x88] sm:$0xff]
    %v248 = vld [vmem:[#allocation2 + $0x90] sm:$0xff]
    %v249 = vld [vmem:[#allocation2 + $0x98] sm:$0xff]
    %v250 = vld [vmem:[#allocation2 + $0xa0] sm:$0xff]
    %v251 = vld [vmem:[#allocation2 + $0xa8] sm:$0xff]
    %v252 = vld [vmem:[#allocation2 + $0xb0] sm:$0xff]
    %v253 = vld [vmem:[#allocation2 + $0xb8] sm:$0xff]
    %v254 = vld [vmem:[#allocation2 + $0xc0] sm:$0xff]
    %v255 = vld [vmem:[#allocation2 + $0xc8] sm:$0xff]
    %v256 = vld [vmem:[#allocation2 + $0xd0] sm:$0xff]
    %v257 = vld [vmem:[#allocation2 + $0xd8] sm:$0xff]
    %v258 = vld [vmem:[#allocation2 + $0xe0] sm:$0xff]
    %v259 = vld [vmem:[#allocation2 + $0xe8] sm:$0xff]
    %v260 = vld [vmem:[#allocation2 + $0xf0] sm:$0xff]
    %v261 = vld [vmem:[#allocation2 + $0xf8] sm:$0xff]
    %v262 = vld [vmem:[#allocation2 + $0x100] sm:$0xff]
    %v263 = vld [vmem:[#allocation2 + $0x108] sm:$0xff]
    %v264 = vld [vmem:[#allocation2 + $0x110] sm:$0xff]
    %v265 = vld [vmem:[#allocation2 + $0x118] sm:$0xff]
    %v266 = vld [vmem:[#allocation2 + $0x120] sm:$0xff]
    %v267 = vld [vmem:[#allocation2 + $0x128] sm:$0xff]
    %v268 = vld [vmem:[#allocation2 + $0x130] sm:$0xff]
    %v269 = vld [vmem:[#allocation2 + $0x138] sm:$0xff]
    %v270 = vld [vmem:[#allocation2 + $0x140] sm:$0xff]
    %v271 = vld [vmem:[#allocation2 + $0x148] sm:$0xff]
    %v272 = vld [vmem:[#allocation2 + $0x150] sm:$0xff]
    %v273 = vld [vmem:[#allocation2 + $0x158] sm:$0xff]
    %v274 = vld [vmem:[#allocation2 + $0x160] sm:$0xff]
    %v275 = vld [vmem:[#allocation2 + $0x168] sm:$0xff]
    %v276 = vld [vmem:[#allocation2 + $0x170] sm:$0xff]
    %v277 = vld [vmem:[#allocation2 + $0x178] sm:$0xff]
    %v278 = vld [vmem:[#allocation2 + $0x180] sm:$0xff]
    %v279 = vld [vmem:[#allocation2 + $0x188] sm:$0xff]
    %v280 = vld [vmem:[#allocation2 + $0x190] sm:$0xff]
    %v281 = vld [vmem:[#allocation2 + $0x198] sm:$0xff]
    %v282 = vld [vmem:[#allocation2 + $0x1a0] sm:$0xff]
    %v283 = vld [vmem:[#allocation2 + $0x1a8] sm:$0xff]
    %v284 = vld [vmem:[#allocation2 + $0x1b0] sm:$0xff]
    %v285 = vld [vmem:[#allocation2 + $0x1b8] sm:$0xff]
    %v286 = vld [vmem:[#allocation2 + $0x1c0] sm:$0xff]
    %v287 = vld [vmem:[#allocation2 + $0x1c8] sm:$0xff]
    %v288 = vld [vmem:[#allocation2 + $0x1d0] sm:$0xff]
    %v289 = vld [vmem:[#allocation2 + $0x1d8] sm:$0xff]
    %v290 = vld [vmem:[#allocation2 + $0x1e0] sm:$0xff]
    %v291 = vld [vmem:[#allocation2 + $0x1e8] sm:$0xff]
    %v292 = vld [vmem:[#allocation2 + $0x1f0] sm:$0xff]
    %v293 = vld [vmem:[#allocation2 + $0x1f8] sm:$0xff]
    %v294 = vld [vmem:[#allocation2 + $0x200] sm:$0xff]
    %v295 = vld [vmem:[#allocation2 + $0x208] sm:$0xff]
    %v296 = vld [vmem:[#allocation2 + $0x210] sm:$0xff]
    %v297 = vld [vmem:[#allocation2 + $0x218] sm:$0xff]
    %v298 = vld [vmem:[#allocation2 + $0x220] sm:$0xff]
    %v299 = vld [vmem:[#allocation2 + $0x228] sm:$0xff]
    %v300 = vld [vmem:[#allocation2 + $0x230] sm:$0xff]
    %v301 = vld [vmem:[#allocation2 + $0x238] sm:$0xff]
    %v302 = vld [vmem:[#allocation2 + $0x240] sm:$0xff]
    %v303 = vld [vmem:[#allocation2 + $0x248] sm:$0xff]
    %v304 = vld [vmem:[#allocation2 + $0x250] sm:$0xff]
    %v305 = vld [vmem:[#allocation2 + $0x258] sm:$0xff]
    %v306 = vld [vmem:[#allocation2 + $0x260] sm:$0xff]
    %v307 = vld [vmem:[#allocation2 + $0x268] sm:$0xff]
    %v308 = vld [vmem:[#allocation2 + $0x270] sm:$0xff]
    %v309 = vld [vmem:[#allocation2 + $0x278] sm:$0xff]
    %v310 = vld [vmem:[#allocation2 + $0x280] sm:$0xff]
    %v311 = vld [vmem:[#allocation2 + $0x288] sm:$0xff]
    %v312 = vld [vmem:[#allocation2 + $0x290] sm:$0xff]
    %v313 = vld [vmem:[#allocation2 + $0x298] sm:$0xff]
    %v314 = vld [vmem:[#allocation2 + $0x2a0] sm:$0xff]
    %v315 = vld [vmem:[#allocation2 + $0x2a8] sm:$0xff]
    %v316 = vld [vmem:[#allocation2 + $0x2b0] sm:$0xff]
    %v317 = vld [vmem:[#allocation2 + $0x2b8] sm:$0xff]
    %v318 = vld [vmem:[#allocation2 + $0x2c0] sm:$0xff]
    %v319 = vld [vmem:[#allocation2 + $0x2c8] sm:$0xff]
    %v320 = vld [vmem:[#allocation2 + $0x2d0] sm:$0xff]
    %v321 = vld [vmem:[#allocation2 + $0x2d8] sm:$0xff]
    %v322 = vld [vmem:[#allocation2 + $0x2e0] sm:$0xff]
    %v323 = vld [vmem:[#allocation2 + $0x2e8] sm:$0xff]
    %v324 = vld [vmem:[#allocation2 + $0x2f0] sm:$0xff]
    %v325 = vld [vmem:[#allocation2 + $0x2f8] sm:$0xff]
    %v326 = vld [vmem:[#allocation2 + $0x300] sm:$0xff]
    %v327 = vld [vmem:[#allocation2 + $0x308] sm:$0xff]
    %v328 = vld [vmem:[%s2] sm:$0x3]
    %v330 = vlaneseq
    %v331 = vshrl.u32 %v330, 7
    %v332 = vsub.s32 0, %v331
    %v333 = vrot.slane %v328, %v332
    %v334 = vlaneseq
    %v335 = vshrl.u32 %v334, 7
    %v336 = vsub.s32 1, %v335
    %v337 = vrot.slane %v328, %v336
    %v438 = vunpack.c.l.b16 %v230
    %v439 = vunpack.c.h.b16 %v230
    %v440 = vunpack.c.l.b16 %v231
    %v441 = vunpack.c.h.b16 %v231
    %v442 = vunpack.c.l.b16 %v232
    %v443 = vunpack.c.h.b16 %v232
    %v444 = vunpack.c.l.b16 %v233
    %v445 = vunpack.c.h.b16 %v233
    %v446 = vunpack.c.l.b16 %v234
    %v447 = vunpack.c.h.b16 %v234
    %v448 = vunpack.c.l.b16 %v235
    %v449 = vunpack.c.h.b16 %v235
    %v450 = vunpack.c.l.b16 %v236
    %v451 = vunpack.c.h.b16 %v236
    %v452 = vunpack.c.l.b16 %v237
    %v453 = vunpack.c.h.b16 %v237
    %v454 = vunpack.c.l.b16 %v238
    %v455 = vunpack.c.h.b16 %v238
    %v456 = vunpack.c.l.b16 %v239
    %v457 = vunpack.c.h.b16 %v239
    %v458 = vunpack.c.l.b16 %v240
    %v459 = vunpack.c.h.b16 %v240
    %v460 = vunpack.c.l.b16 %v241
    %v461 = vunpack.c.h.b16 %v241
    %v462 = vunpack.c.l.b16 %v242
    %v463 = vunpack.c.h.b16 %v242
    %v464 = vunpack.c.l.b16 %v243
    %v465 = vunpack.c.h.b16 %v243
    %v466 = vunpack.c.l.b16 %v244
    %v467 = vunpack.c.h.b16 %v244
    %v468 = vunpack.c.l.b16 %v245
    %v469 = vunpack.c.h.b16 %v245
    %v470 = vunpack.c.l.b16 %v246
    %v471 = vunpack.c.h.b16 %v246
    %v472 = vunpack.c.l.b16 %v247
    %v473 = vunpack.c.h.b16 %v247
    %v474 = vunpack.c.l.b16 %v248
    %v475 = vunpack.c.h.b16 %v248
    %v476 = vunpack.c.l.b16 %v249
    %v477 = vunpack.c.h.b16 %v249
    %v478 = vunpack.c.l.b16 %v250
    %v479 = vunpack.c.h.b16 %v250
    %v480 = vunpack.c.l.b16 %v251
    %v481 = vunpack.c.h.b16 %v251
    %v482 = vunpack.c.l.b16 %v252
    %v483 = vunpack.c.h.b16 %v252
    %v484 = vunpack.c.l.b16 %v253
    %v485 = vunpack.c.h.b16 %v253
    %v486 = vunpack.c.l.b16 %v254
    %v487 = vunpack.c.h.b16 %v254
    %v488 = vunpack.c.l.b16 %v255
    %v489 = vunpack.c.h.b16 %v255
    %v490 = vunpack.c.l.b16 %v256
    %v491 = vunpack.c.h.b16 %v256
    %v492 = vunpack.c.l.b16 %v257
    %v493 = vunpack.c.h.b16 %v257
    %v494 = vunpack.c.l.b16 %v258
    %v495 = vunpack.c.h.b16 %v258
    %v496 = vunpack.c.l.b16 %v259
    %v497 = vunpack.c.h.b16 %v259
    %v498 = vunpack.c.l.b16 %v260
    %v499 = vunpack.c.h.b16 %v260
    %v500 = vunpack.c.l.b16 %v261
    %v501 = vunpack.c.h.b16 %v261
    %v502 = vunpack.c.l.b16 %v262
    %v503 = vunpack.c.h.b16 %v262
    %v504 = vunpack.c.l.b16 %v263
    %v505 = vunpack.c.h.b16 %v263
    %v506 = vunpack.c.l.b16 %v264
    %v507 = vunpack.c.h.b16 %v264
    %v508 = vunpack.c.l.b16 %v265
    %v509 = vunpack.c.h.b16 %v265
    %v510 = vunpack.c.l.b16 %v266
    %v511 = vunpack.c.h.b16 %v266
    %v512 = vunpack.c.l.b16 %v267
    %v513 = vunpack.c.h.b16 %v267
    %v514 = vunpack.c.l.b16 %v268
    %v515 = vunpack.c.h.b16 %v268
    %v516 = vunpack.c.l.b16 %v269
    %v517 = vunpack.c.h.b16 %v269
    %v518 = vunpack.c.l.b16 %v270
    %v519 = vunpack.c.h.b16 %v270
    %v520 = vunpack.c.l.b16 %v271
    %v521 = vunpack.c.h.b16 %v271
    %v522 = vunpack.c.l.b16 %v272
    %v523 = vunpack.c.h.b16 %v272
    %v524 = vunpack.c.l.b16 %v273
    %v525 = vunpack.c.h.b16 %v273
    %v526 = vunpack.c.l.b16 %v274
    %v527 = vunpack.c.h.b16 %v274
    %v528 = vunpack.c.l.b16 %v275
    %v529 = vunpack.c.h.b16 %v275
    %v530 = vunpack.c.l.b16 %v276
    %v531 = vunpack.c.h.b16 %v276
    %v532 = vunpack.c.l.b16 %v277
    %v533 = vunpack.c.h.b16 %v277
    %v534 = vunpack.c.l.b16 %v278
    %v535 = vunpack.c.h.b16 %v278
    %v536 = vunpack.c.l.b16 %v279
    %v537 = vunpack.c.h.b16 %v279
    %v538 = vunpack.c.l.b16 %v280
    %v539 = vunpack.c.h.b16 %v280
    %v540 = vunpack.c.l.b16 %v281
    %v541 = vunpack.c.h.b16 %v281
    %v542 = vunpack.c.l.b16 %v282
    %v543 = vunpack.c.h.b16 %v282
    %v544 = vunpack.c.l.b16 %v283
    %v545 = vunpack.c.h.b16 %v283
    %v546 = vunpack.c.l.b16 %v284
    %v547 = vunpack.c.h.b16 %v284
    %v548 = vunpack.c.l.b16 %v285
    %v549 = vunpack.c.h.b16 %v285
    %v550 = vunpack.c.l.b16 %v286
    %v551 = vunpack.c.h.b16 %v286
    %v552 = vunpack.c.l.b16 %v287
    %v553 = vunpack.c.h.b16 %v287
    %v554 = vunpack.c.l.b16 %v288
    %v555 = vunpack.c.h.b16 %v288
    %v556 = vunpack.c.l.b16 %v289
    %v557 = vunpack.c.h.b16 %v289
    %v558 = vunpack.c.l.b16 %v290
    %v559 = vunpack.c.h.b16 %v290
    %v560 = vunpack.c.l.b16 %v291
    %v561 = vunpack.c.h.b16 %v291
    %v562 = vunpack.c.l.b16 %v292
    %v563 = vunpack.c.h.b16 %v292
    %v564 = vunpack.c.l.b16 %v293
    %v565 = vunpack.c.h.b16 %v293
    %v566 = vunpack.c.l.b16 %v294
    %v567 = vunpack.c.h.b16 %v294
    %v568 = vunpack.c.l.b16 %v295
    %v569 = vunpack.c.h.b16 %v295
    %v570 = vunpack.c.l.b16 %v296
    %v571 = vunpack.c.h.b16 %v296
    %v572 = vunpack.c.l.b16 %v297
    %v573 = vunpack.c.h.b16 %v297
    %v574 = vunpack.c.l.b16 %v298
    %v575 = vunpack.c.h.b16 %v298
    %v576 = vunpack.c.l.b16 %v299
    %v577 = vunpack.c.h.b16 %v299
    %v578 = vunpack.c.l.b16 %v300
    %v579 = vunpack.c.h.b16 %v300
    %v580 = vunpack.c.l.b16 %v301
    %v581 = vunpack.c.h.b16 %v301
    %v582 = vunpack.c.l.b16 %v302
    %v583 = vunpack.c.h.b16 %v302
    %v584 = vunpack.c.l.b16 %v303
    %v585 = vunpack.c.h.b16 %v303
    %v586 = vunpack.c.l.b16 %v304
    %v587 = vunpack.c.h.b16 %v304
    %v588 = vunpack.c.l.b16 %v305
    %v589 = vunpack.c.h.b16 %v305
    %v590 = vunpack.c.l.b16 %v306
    %v591 = vunpack.c.h.b16 %v306
    %v592 = vunpack.c.l.b16 %v307
    %v593 = vunpack.c.h.b16 %v307
    %v594 = vunpack.c.l.b16 %v308
    %v595 = vunpack.c.h.b16 %v308
    %v596 = vunpack.c.l.b16 %v309
    %v597 = vunpack.c.h.b16 %v309
    %v598 = vunpack.c.l.b16 %v310
    %v599 = vunpack.c.h.b16 %v310
    %v600 = vunpack.c.l.b16 %v311
    %v601 = vunpack.c.h.b16 %v311
    %v602 = vunpack.c.l.b16 %v312
    %v603 = vunpack.c.h.b16 %v312
    %v604 = vunpack.c.l.b16 %v313
    %v605 = vunpack.c.h.b16 %v313
    %v606 = vunpack.c.l.b16 %v314
    %v607 = vunpack.c.h.b16 %v314
    %v608 = vunpack.c.l.b16 %v315
    %v609 = vunpack.c.h.b16 %v315
    %v610 = vunpack.c.l.b16 %v316
    %v611 = vunpack.c.h.b16 %v316
    %v612 = vunpack.c.l.b16 %v317
    %v613 = vunpack.c.h.b16 %v317
    %v614 = vunpack.c.l.b16 %v318
    %v615 = vunpack.c.h.b16 %v318
    %v616 = vunpack.c.l.b16 %v319
    %v617 = vunpack.c.h.b16 %v319
    %v618 = vunpack.c.l.b16 %v320
    %v619 = vunpack.c.h.b16 %v320
    %v620 = vunpack.c.l.b16 %v321
    %v621 = vunpack.c.h.b16 %v321
    %v622 = vunpack.c.l.b16 %v322
    %v623 = vunpack.c.h.b16 %v322
    %v624 = vunpack.c.l.b16 %v323
    %v625 = vunpack.c.h.b16 %v323
    %v626 = vunpack.c.l.b16 %v324
    %v627 = vunpack.c.h.b16 %v324
    %v628 = vunpack.c.l.b16 %v325
    %v629 = vunpack.c.h.b16 %v325
    %v630 = vunpack.c.l.b16 %v326
    %v631 = vunpack.c.h.b16 %v326
    %v632 = vunpack.c.l.b16 %v327
    %v633 = vunpack.c.h.b16 %v327
    %v634 = vpack.c.b16 %v440, %v438
    %v635 = vpack.c.b16 %v441, %v439
    %v636 = vpack.c.b16 %v444, %v442
    %v637 = vpack.c.b16 %v445, %v443
    %v638 = vpack.c.b16 %v448, %v446
    %v639 = vpack.c.b16 %v449, %v447
    %v640 = vpack.c.b16 %v452, %v450
    %v641 = vpack.c.b16 %v453, %v451
    %v642 = vpack.c.b16 %v456, %v454
    %v643 = vpack.c.b16 %v457, %v455
    %v644 = vpack.c.b16 %v460, %v458
    %v645 = vpack.c.b16 %v461, %v459
    %v646 = vpack.c.b16 %v464, %v462
    %v647 = vpack.c.b16 %v465, %v463
    %v648 = vpack.c.b16 %v468, %v466
    %v649 = vpack.c.b16 %v469, %v467
    %v650 = vpack.c.b16 %v472, %v470
    %v651 = vpack.c.b16 %v473, %v471
    %v652 = vpack.c.b16 %v476, %v474
    %v653 = vpack.c.b16 %v477, %v475
    %v654 = vpack.c.b16 %v480, %v478
    %v655 = vpack.c.b16 %v481, %v479
    %v656 = vpack.c.b16 %v484, %v482
    %v657 = vpack.c.b16 %v485, %v483
    %v658 = vpack.c.b16 %v488, %v486
    %v659 = vpack.c.b16 %v489, %v487
    %v660 = vpack.c.b16 %v492, %v490
    %v661 = vpack.c.b16 %v493, %v491
    %v662 = vpack.c.b16 %v496, %v494
    %v663 = vpack.c.b16 %v497, %v495
    %v664 = vpack.c.b16 %v500, %v498
    %v665 = vpack.c.b16 %v501, %v499
    %v666 = vpack.c.b16 %v504, %v502
    %v667 = vpack.c.b16 %v505, %v503
    %v668 = vpack.c.b16 %v508, %v506
    %v669 = vpack.c.b16 %v509, %v507
    %v670 = vpack.c.b16 %v512, %v510
    %v671 = vpack.c.b16 %v513, %v511
    %v672 = vpack.c.b16 %v516, %v514
    %v673 = vpack.c.b16 %v517, %v515
    %v674 = vpack.c.b16 %v520, %v518
    %v675 = vpack.c.b16 %v521, %v519
    %v676 = vpack.c.b16 %v524, %v522
    %v677 = vpack.c.b16 %v525, %v523
    %v678 = vpack.c.b16 %v528, %v526
    %v679 = vpack.c.b16 %v529, %v527
    %v680 = vpack.c.b16 %v532, %v530
    %v681 = vpack.c.b16 %v533, %v531
    %v682 = vpack.c.b16 %v536, %v534
    %v683 = vpack.c.b16 %v537, %v535
    %v684 = vpack.c.b16 %v540, %v538
    %v685 = vpack.c.b16 %v541, %v539
    %v686 = vpack.c.b16 %v544, %v542
    %v687 = vpack.c.b16 %v545, %v543
    %v688 = vpack.c.b16 %v548, %v546
    %v689 = vpack.c.b16 %v549, %v547
    %v690 = vpack.c.b16 %v552, %v550
    %v691 = vpack.c.b16 %v553, %v551
    %v692 = vpack.c.b16 %v556, %v554
    %v693 = vpack.c.b16 %v557, %v555
    %v694 = vpack.c.b16 %v560, %v558
    %v695 = vpack.c.b16 %v561, %v559
    %v696 = vpack.c.b16 %v564, %v562
    %v697 = vpack.c.b16 %v565, %v563
    %v698 = vpack.c.b16 %v568, %v566
    %v699 = vpack.c.b16 %v569, %v567
    %v700 = vpack.c.b16 %v572, %v570
    %v701 = vpack.c.b16 %v573, %v571
    %v702 = vpack.c.b16 %v576, %v574
    %v703 = vpack.c.b16 %v577, %v575
    %v704 = vpack.c.b16 %v580, %v578
    %v705 = vpack.c.b16 %v581, %v579
    %v706 = vpack.c.b16 %v584, %v582
    %v707 = vpack.c.b16 %v585, %v583
    %v708 = vpack.c.b16 %v588, %v586
    %v709 = vpack.c.b16 %v589, %v587
    %v710 = vpack.c.b16 %v592, %v590
    %v711 = vpack.c.b16 %v593, %v591
    %v712 = vpack.c.b16 %v596, %v594
    %v713 = vpack.c.b16 %v597, %v595
    %v714 = vpack.c.b16 %v600, %v598
    %v715 = vpack.c.b16 %v601, %v599
    %v716 = vpack.c.b16 %v604, %v602
    %v717 = vpack.c.b16 %v605, %v603
    %v718 = vpack.c.b16 %v608, %v606
    %v719 = vpack.c.b16 %v609, %v607
    %v720 = vpack.c.b16 %v612, %v610
    %v721 = vpack.c.b16 %v613, %v611
    %v722 = vpack.c.b16 %v616, %v614
    %v723 = vpack.c.b16 %v617, %v615
    %v724 = vpack.c.b16 %v620, %v618
    %v725 = vpack.c.b16 %v621, %v619
    %v726 = vpack.c.b16 %v624, %v622
    %v727 = vpack.c.b16 %v625, %v623
    %v728 = vpack.c.b16 %v628, %v626
    %v729 = vpack.c.b16 %v629, %v627
    %v730 = vpack.c.b16 %v632, %v630
    %v731 = vpack.c.b16 %v633, %v631
    %vm830 = vcmask 130048
    %v832 = vsel %vm830, %v229, 0
    %834 = vmatprep.subr.bf16.mxu0 %v635
    %835 = vmatpush1.bf16.msra.mxu0 %v634
    %836 = vmatprep.subr.bf16.mxu0 %v637
    %837 = vmatpush1.bf16.msra.mxu0 %v636
    %838 = vmatprep.subr.bf16.mxu0 %v639
    %839 = vmatpush1.bf16.msra.mxu0 %v638
    %840 = vmatprep.subr.bf16.mxu0 %v641
    %841 = vmatpush1.bf16.msra.mxu0 %v640
    %842 = vmatprep.subr.bf16.mxu0 %v643
    %843 = vmatpush1.bf16.msra.mxu0 %v642
    %844 = vmatprep.subr.bf16.mxu0 %v645
    %845 = vmatpush1.bf16.msra.mxu0 %v644
    %846 = vmatprep.subr.bf16.mxu0 %v647
    %847 = vmatpush1.bf16.msra.mxu0 %v646
    %848 = vmatprep.subr.bf16.mxu0 %v649
    %849 = vmatpush1.bf16.msra.mxu0 %v648
    %850 = vmatprep.subr.bf16.mxu0 %v651
    %851 = vmatpush1.bf16.msra.mxu0 %v650
    %852 = vmatprep.subr.bf16.mxu0 %v653
    %853 = vmatpush1.bf16.msra.mxu0 %v652
    %854 = vmatprep.subr.bf16.mxu0 %v655
    %855 = vmatpush1.bf16.msra.mxu0 %v654
    %856 = vmatprep.subr.bf16.mxu0 %v657
    %857 = vmatpush1.bf16.msra.mxu0 %v656
    %858 = vmatprep.subr.bf16.mxu0 %v659
    %859 = vmatpush1.bf16.msra.mxu0 %v658
    %860 = vmatprep.subr.bf16.mxu0 %v661
    %861 = vmatpush1.bf16.msra.mxu0 %v660
    %862 = vmatprep.subr.bf16.mxu0 %v663
    %863 = vmatpush1.bf16.msra.mxu0 %v662
    %864 = vmatprep.subr.bf16.mxu0 %v665
    %865 = vmatpush1.bf16.msra.mxu0 %v664
    %866 = vmatprep.mubr.bf16.mxu0 %v224
    %867 = vmatmul.mubr.bf16.gmra.mrb[0].mxu0 %v223
    %v868 = vpop.f32.mrb[0].mxu0
    %v869 = vadd.f32 %v333, %v868
    %v870 = vpop.f32.mrb[0].mxu0
    %v871 = vadd.f32 %v337, %v870
    %v872 = vpop.f32.mrb[0].mxu0
    %v873 = vadd.f32 %v333, %v872
    %v874 = vpop.f32.mrb[0].mxu0
    %v875 = vadd.f32 %v337, %v874
    %876 = vdwg.mxu0
    %877 = vmatprep.subr.bf16.mxu0 %v667
    %878 = vmatpush1.bf16.msra.mxu0 %v666
    %879 = vmatprep.subr.bf16.mxu0 %v669
    %880 = vmatpush1.bf16.msra.mxu0 %v668
    %881 = vmatprep.subr.bf16.mxu0 %v671
    %882 = vmatpush1.bf16.msra.mxu0 %v670
    %883 = vmatprep.subr.bf16.mxu0 %v673
    %884 = vmatpush1.bf16.msra.mxu0 %v672
    %885 = vmatprep.subr.bf16.mxu0 %v675
    %886 = vmatpush1.bf16.msra.mxu0 %v674
    %887 = vmatprep.subr.bf16.mxu0 %v677
    %888 = vmatpush1.bf16.msra.mxu0 %v676
    %889 = vmatprep.subr.bf16.mxu0 %v679
    %890 = vmatpush1.bf16.msra.mxu0 %v678
    %891 = vmatprep.subr.bf16.mxu0 %v681
    %892 = vmatpush1.bf16.msra.mxu0 %v680
    %893 = vmatprep.subr.bf16.mxu0 %v683
    %894 = vmatpush1.bf16.msra.mxu0 %v682
    %895 = vmatprep.subr.bf16.mxu0 %v685
    %896 = vmatpush1.bf16.msra.mxu0 %v684
    %897 = vmatprep.subr.bf16.mxu0 %v687
    %898 = vmatpush1.bf16.msra.mxu0 %v686
    %899 = vmatprep.subr.bf16.mxu0 %v689
    %900 = vmatpush1.bf16.msra.mxu0 %v688
    %901 = vmatprep.subr.bf16.mxu0 %v691
    %902 = vmatpush1.bf16.msra.mxu0 %v690
    %903 = vmatprep.subr.bf16.mxu0 %v693
    %904 = vmatpush1.bf16.msra.mxu0 %v692
    %905 = vmatprep.subr.bf16.mxu0 %v695
    %906 = vmatpush1.bf16.msra.mxu0 %v694
    %907 = vmatprep.subr.bf16.mxu0 %v697
    %908 = vmatpush1.bf16.msra.mxu0 %v696
    %909 = vmatprep.mubr.bf16.mxu0 %v226
    %910 = vmatmul.mubr.bf16.gmra.mrb[0].mxu0 %v225
    %v911 = vpop.f32.mrb[0].mxu0
    %v912 = vadd.f32 %v869, %v911
    %v913 = vpop.f32.mrb[0].mxu0
    %v914 = vadd.f32 %v871, %v913
    %v915 = vpop.f32.mrb[0].mxu0
    %v916 = vadd.f32 %v873, %v915
    %v917 = vpop.f32.mrb[0].mxu0
    %v918 = vadd.f32 %v875, %v917
    %919 = vdwg.mxu0
    %920 = vmatprep.subr.bf16.mxu0 %v699
    %921 = vmatpush1.bf16.msra.mxu0 %v698
    %922 = vmatprep.subr.bf16.mxu0 %v701
    %923 = vmatpush1.bf16.msra.mxu0 %v700
    %924 = vmatprep.subr.bf16.mxu0 %v703
    %925 = vmatpush1.bf16.msra.mxu0 %v702
    %926 = vmatprep.subr.bf16.mxu0 %v705
    %927 = vmatpush1.bf16.msra.mxu0 %v704
    %928 = vmatprep.subr.bf16.mxu0 %v707
    %929 = vmatpush1.bf16.msra.mxu0 %v706
    %930 = vmatprep.subr.bf16.mxu0 %v709
    %931 = vmatpush1.bf16.msra.mxu0 %v708
    %932 = vmatprep.subr.bf16.mxu0 %v711
    %933 = vmatpush1.bf16.msra.mxu0 %v710
    %934 = vmatprep.subr.bf16.mxu0 %v713
    %935 = vmatpush1.bf16.msra.mxu0 %v712
    %936 = vmatprep.subr.bf16.mxu0 %v715
    %937 = vmatpush1.bf16.msra.mxu0 %v714
    %938 = vmatprep.subr.bf16.mxu0 %v717
    %939 = vmatpush1.bf16.msra.mxu0 %v716
    %940 = vmatprep.subr.bf16.mxu0 %v719
    %941 = vmatpush1.bf16.msra.mxu0 %v718
    %942 = vmatprep.subr.bf16.mxu0 %v721
    %943 = vmatpush1.bf16.msra.mxu0 %v720
    %944 = vmatprep.subr.bf16.mxu0 %v723
    %945 = vmatpush1.bf16.msra.mxu0 %v722
    %946 = vmatprep.subr.bf16.mxu0 %v725
    %947 = vmatpush1.bf16.msra.mxu0 %v724
    %948 = vmatprep.subr.bf16.mxu0 %v727
    %949 = vmatpush1.bf16.msra.mxu0 %v726
    %950 = vmatprep.subr.bf16.mxu0 %v729
    %951 = vmatpush1.bf16.msra.mxu0 %v728
    %952 = vmatprep.mubr.bf16.mxu0 %v228
    %953 = vmatmul.mubr.bf16.gmra.mrb[0].mxu0 %v227
    %v954 = vpop.f32.mrb[0].mxu0
    %v955 = vadd.f32 %v912, %v954
    %v956 = vpop.f32.mrb[0].mxu0
    %v957 = vadd.f32 %v914, %v956
    %v958 = vpop.f32.mrb[0].mxu0
    %v959 = vadd.f32 %v916, %v958
    %v960 = vpop.f32.mrb[0].mxu0
    %v961 = vadd.f32 %v918, %v960
    %962 = vdwg.mxu0
    %963 = vmatprep.subr.bf16.mxu0 %v731
    %964 = vmatpush1.bf16.msra.mxu0 %v730
    %965 = vmatprep.subr.bf16.mxu0 0
    %966 = vmatpush1.bf16.msra.mxu0 0
    %967 = vmatprep.subr.bf16.mxu0 0
    %968 = vmatpush1.bf16.msra.mxu0 0
    %969 = vmatprep.subr.bf16.mxu0 0
    %970 = vmatpush1.bf16.msra.mxu0 0
    %971 = vmatprep.subr.bf16.mxu0 0
    %972 = vmatpush1.bf16.msra.mxu0 0
    %973 = vmatprep.subr.bf16.mxu0 0
    %974 = vmatpush1.bf16.msra.mxu0 0
    %975 = vmatprep.subr.bf16.mxu0 0
    %976 = vmatpush1.bf16.msra.mxu0 0
    %977 = vmatprep.subr.bf16.mxu0 0
    %978 = vmatpush1.bf16.msra.mxu0 0
    %979 = vmatprep.subr.bf16.mxu0 0
    %980 = vmatpush1.bf16.msra.mxu0 0
    %981 = vmatprep.subr.bf16.mxu0 0
    %982 = vmatpush1.bf16.msra.mxu0 0
    %983 = vmatprep.subr.bf16.mxu0 0
    %984 = vmatpush1.bf16.msra.mxu0 0
    %985 = vmatprep.subr.bf16.mxu0 0
    %986 = vmatpush1.bf16.msra.mxu0 0
    %987 = vmatprep.subr.bf16.mxu0 0
    %988 = vmatpush1.bf16.msra.mxu0 0
    %989 = vmatprep.subr.bf16.mxu0 0
    %990 = vmatpush1.bf16.msra.mxu0 0
    %991 = vmatprep.subr.bf16.mxu0 0
    %992 = vmatpush1.bf16.msra.mxu0 0
    %993 = vmatprep.subr.bf16.mxu0 0
    %994 = vmatpush1.bf16.msra.mxu0 0
    %995 = vmatprep.mubr.bf16.mxu0 0
    %996 = vmatmul.mubr.bf16.gmra.mrb[0].mxu0 %v832
    %v997 = vpop.f32.mrb[0].mxu0
    %v998 = vadd.f32 %v955, %v997
    %v999 = vpop.f32.mrb[0].mxu0
    %v1000 = vadd.f32 %v957, %v999
    %v1001 = vpop.f32.mrb[0].mxu0
    %v1002 = vadd.f32 %v959, %v1001
    %v1003 = vpop.f32.mrb[0].mxu0
    %v1004 = vadd.f32 %v961, %v1003
    %1005 = vdwg.mxu0
    %v1006 = vmax.f32 %v998, 0.0
    %v1007 = vmax.f32 %v1000, 0.0
    %v1008 = vmax.f32 %v1002, 0.0
    %v1009 = vmax.f32 %v1004, 0.0
    %v1010 = vpack.c.bf16 %v1008, %v1006
    %v1011 = vpack.c.bf16 %v1009, %v1007
    %v1012 = vld [vmem:[%s3] sm:$0xf]
    %v1013 = vld [vmem:[%s3 + $0x4] sm:$0xf]
    %v1014 = vld [vmem:[%s3 + $0x8] sm:$0xf]
    %v1015 = vld [vmem:[%s3 + $0xc] sm:$0xf]
    %v1016 = vld [vmem:[%s3 + $0x10] sm:$0xf]
    %v1017 = vld [vmem:[%s3 + $0x14] sm:$0xf]
    %v1018 = vld [vmem:[%s3 + $0x18] sm:$0xf]
    %v1019 = vld [vmem:[%s3 + $0x1c] sm:$0xf]
    %v1020 = vld [vmem:[%s3 + $0x20] sm:$0xf]
    %v1021 = vld [vmem:[%s3 + $0x24] sm:$0xf]
    %v1022 = vld [vmem:[%s3 + $0x28] sm:$0xf]
    %v1023 = vld [vmem:[%s3 + $0x2c] sm:$0xf]
    %v1024 = vld [vmem:[%s3 + $0x30] sm:$0xf]
    %v1025 = vld [vmem:[%s3 + $0x34] sm:$0xf]
    %v1026 = vld [vmem:[%s3 + $0x38] sm:$0xf]
    %v1027 = vld [vmem:[%s3 + $0x3c] sm:$0xf]
    %v1028 = vld [vmem:[%s3 + $0x40] sm:$0xf]
    %v1029 = vld [vmem:[%s3 + $0x44] sm:$0xf]
    %v1030 = vld [vmem:[%s3 + $0x48] sm:$0xf]
    %v1031 = vld [vmem:[%s3 + $0x4c] sm:$0xf]
    %v1032 = vld [vmem:[%s3 + $0x50] sm:$0xf]
    %v1033 = vld [vmem:[%s3 + $0x54] sm:$0xf]
    %v1034 = vld [vmem:[%s3 + $0x58] sm:$0xf]
    %v1035 = vld [vmem:[%s3 + $0x5c] sm:$0xf]
    %v1036 = vld [vmem:[%s3 + $0x60] sm:$0xf]
    %v1037 = vld [vmem:[%s3 + $0x64] sm:$0xf]
    %v1038 = vld [vmem:[%s3 + $0x68] sm:$0xf]
    %v1039 = vld [vmem:[%s3 + $0x6c] sm:$0xf]
    %v1040 = vld [vmem:[%s3 + $0x70] sm:$0xf]
    %v1041 = vld [vmem:[%s3 + $0x74] sm:$0xf]
    %v1042 = vld [vmem:[%s3 + $0x78] sm:$0xf]
    %v1043 = vld [vmem:[%s3 + $0x7c] sm:$0xf]
    %v1044 = vld [vmem:[%s4] sm:$0x1]
    %v1046 = vlaneseq
    %v1047 = vshrl.u32 %v1046, 7
    %v1048 = vsub.s32 0, %v1047
    %v1049 = vrot.slane %v1044, %v1048
    %v1083 = vunpack.c.l.b16 %v1012
    %v1084 = vunpack.c.l.b16 %v1013
    %v1085 = vunpack.c.l.b16 %v1014
    %v1086 = vunpack.c.l.b16 %v1015
    %v1087 = vunpack.c.l.b16 %v1016
    %v1088 = vunpack.c.l.b16 %v1017
    %v1089 = vunpack.c.l.b16 %v1018
    %v1090 = vunpack.c.l.b16 %v1019
    %v1091 = vunpack.c.l.b16 %v1020
    %v1092 = vunpack.c.l.b16 %v1021
    %v1093 = vunpack.c.l.b16 %v1022
    %v1094 = vunpack.c.l.b16 %v1023
    %v1095 = vunpack.c.l.b16 %v1024
    %v1096 = vunpack.c.l.b16 %v1025
    %v1097 = vunpack.c.l.b16 %v1026
    %v1098 = vunpack.c.l.b16 %v1027
    %v1099 = vunpack.c.l.b16 %v1028
    %v1100 = vunpack.c.l.b16 %v1029
    %v1101 = vunpack.c.l.b16 %v1030
    %v1102 = vunpack.c.l.b16 %v1031
    %v1103 = vunpack.c.l.b16 %v1032
    %v1104 = vunpack.c.l.b16 %v1033
    %v1105 = vunpack.c.l.b16 %v1034
    %v1106 = vunpack.c.l.b16 %v1035
    %v1107 = vunpack.c.l.b16 %v1036
    %v1108 = vunpack.c.l.b16 %v1037
    %v1109 = vunpack.c.l.b16 %v1038
    %v1110 = vunpack.c.l.b16 %v1039
    %v1111 = vunpack.c.l.b16 %v1040
    %v1112 = vunpack.c.l.b16 %v1041
    %v1113 = vunpack.c.l.b16 %v1042
    %v1114 = vunpack.c.l.b16 %v1043
    %v1115 = vpack.c.b16 %v1084, %v1083
    %v1116 = vpack.c.b16 %v1086, %v1085
    %v1117 = vpack.c.b16 %v1088, %v1087
    %v1118 = vpack.c.b16 %v1090, %v1089
    %v1119 = vpack.c.b16 %v1092, %v1091
    %v1120 = vpack.c.b16 %v1094, %v1093
    %v1121 = vpack.c.b16 %v1096, %v1095
    %v1122 = vpack.c.b16 %v1098, %v1097
    %v1123 = vpack.c.b16 %v1100, %v1099
    %v1124 = vpack.c.b16 %v1102, %v1101
    %v1125 = vpack.c.b16 %v1104, %v1103
    %v1126 = vpack.c.b16 %v1106, %v1105
    %v1127 = vpack.c.b16 %v1108, %v1107
    %v1128 = vpack.c.b16 %v1110, %v1109
    %v1129 = vpack.c.b16 %v1112, %v1111
    %v1130 = vpack.c.b16 %v1114, %v1113
    %1147 = vmatprep.subr.bf16.mxu0 0
    %1148 = vmatpush1.bf16.msra.mxu0 %v1115
    %1149 = vmatprep.subr.bf16.mxu0 0
    %1150 = vmatpush1.bf16.msra.mxu0 %v1116
    %1151 = vmatprep.subr.bf16.mxu0 0
    %1152 = vmatpush1.bf16.msra.mxu0 %v1117
    %1153 = vmatprep.subr.bf16.mxu0 0
    %1154 = vmatpush1.bf16.msra.mxu0 %v1118
    %1155 = vmatprep.subr.bf16.mxu0 0
    %1156 = vmatpush1.bf16.msra.mxu0 %v1119
    %1157 = vmatprep.subr.bf16.mxu0 0
    %1158 = vmatpush1.bf16.msra.mxu0 %v1120
    %1159 = vmatprep.subr.bf16.mxu0 0
    %1160 = vmatpush1.bf16.msra.mxu0 %v1121
    %1161 = vmatprep.subr.bf16.mxu0 0
    %1162 = vmatpush1.bf16.msra.mxu0 %v1122
    %1163 = vmatprep.subr.bf16.mxu0 0
    %1164 = vmatpush1.bf16.msra.mxu0 %v1123
    %1165 = vmatprep.subr.bf16.mxu0 0
    %1166 = vmatpush1.bf16.msra.mxu0 %v1124
    %1167 = vmatprep.subr.bf16.mxu0 0
    %1168 = vmatpush1.bf16.msra.mxu0 %v1125
    %1169 = vmatprep.subr.bf16.mxu0 0
    %1170 = vmatpush1.bf16.msra.mxu0 %v1126
    %1171 = vmatprep.subr.bf16.mxu0 0
    %1172 = vmatpush1.bf16.msra.mxu0 %v1127
    %1173 = vmatprep.subr.bf16.mxu0 0
    %1174 = vmatpush1.bf16.msra.mxu0 %v1128
    %1175 = vmatprep.subr.bf16.mxu0 0
    %1176 = vmatpush1.bf16.msra.mxu0 %v1129
    %1177 = vmatprep.subr.bf16.mxu0 0
    %1178 = vmatpush1.bf16.msra.mxu0 %v1130
    %1179 = vmatprep.mubr.bf16.mxu0 %v1011
    %1180 = vmatmul.mubr.bf16.gmra.mrb[0].mxu0 %v1010
    %v1181 = vpop.f32.mrb[0].mxu0
    %v1182 = vadd.f32 %v1049, %v1181
    %v1183 = vpop.f32.mrb[0].mxu0
    %v1184 = vpop.f32.mrb[0].mxu0
    %v1185 = vadd.f32 %v1049, %v1184
    %v1186 = vpop.f32.mrb[0].mxu0
    %1187 = vdwg.mxu0
    %v1188 = vpack.c.bf16 %v1185, %v1182
    %v1190 = vcombine.high %v1188, %v1188
    %v1192 = vunpack.c.l.s4 1966171168
    %v1193 = vunpack.c.0.s8 %v1192
    %v1194 = vlaneseq
    %v1195 = vshrl.u32 %v1194, 7
    %v1196 = vsub.s32 %v1193, %v1195
    %v1197 = vrot.slane %v1188, %v1196
    %v1199 = vunpack.c.l.s4 1966171168
    %v1200 = vunpack.c.0.s8 %v1199
    %v1201 = vlaneseq
    %v1202 = vshrl.u32 %v1201, 7
    %v1203 = vsub.s32 %v1200, %v1202
    %v1204 = vrot.slane %v1190, %v1203
    %v1205 = vcombine.high %v1197, %v1197
    %v1206 = vcombine.high %v1204, %v1204
    %v1208 = vunpack.c.l.s4 1966171168
    %v1209 = vunpack.c.0.s8 %v1208
    %v1210 = vlaneseq
    %v1211 = vshrl.u32 %v1210, 7
    %v1212 = vsub.s32 %v1209, %v1211
    %v1213 = vrot.slane %v1197, %v1212
    %v1215 = vunpack.c.l.s4 1966171168
    %v1216 = vunpack.c.0.s8 %v1215
    %v1217 = vlaneseq
    %v1218 = vshrl.u32 %v1217, 7
    %v1219 = vsub.s32 %v1216, %v1218
    %v1220 = vrot.slane %v1204, %v1219
    %v1222 = vunpack.c.l.s4 1966171168
    %v1223 = vunpack.c.0.s8 %v1222
    %v1224 = vlaneseq
    %v1225 = vshrl.u32 %v1224, 7
    %v1226 = vsub.s32 %v1223, %v1225
    %v1227 = vrot.slane %v1205, %v1226
    %v1229 = vunpack.c.l.s4 1966171168
    %v1230 = vunpack.c.0.s8 %v1229
    %v1231 = vlaneseq
    %v1232 = vshrl.u32 %v1231, 7
    %v1233 = vsub.s32 %v1230, %v1232
    %v1234 = vrot.slane %v1206, %v1233
    %v1235 = vcombine.high %v1213, %v1213
    %v1236 = vcombine.high %v1220, %v1220
    %v1237 = vcombine.high %v1227, %v1227
    %v1238 = vcombine.high %v1234, %v1234
    %1247 = vst [vmem:[#allocation4] sm:$0x1] %v1213
    %1248 = vst [vmem:[#allocation4 + $0x1] sm:$0x1] %v1227
    %1249 = vst [vmem:[#allocation4 + $0x2] sm:$0x1] %v1235
    %1250 = vst [vmem:[#allocation4 + $0x3] sm:$0x1] %v1237
    %1251 = vst [vmem:[#allocation4 + $0x4] sm:$0x1] %v1220
    %1252 = vst [vmem:[#allocation4 + $0x5] sm:$0x1] %v1234
    %1253 = vst [vmem:[#allocation4 + $0x6] sm:$0x1] %v1236
    %1254 = vst [vmem:[#allocation4 + $0x7] sm:$0x1] %v1238
    // Predicated region
    $region26: #{mlp_forward.1} parent=1 // pred_check
      _
    $region27: #{mlp_forward.1} parent=1 // pred_check_branch
      %1256 = sbr.rel (0) target = $region29
    $region28: #{mlp_forward.1} parent=1 // pred_region
      // Predicated region
      $region30: #{mlp_forward.1} parent=28 // pred_check
        _
      $region31: #{mlp_forward.1} parent=28 // pred_check_branch
        %1258 = sbr.rel (0) target = $region33
      $region32: #{mlp_forward.1} parent=28 // pred_region
        // Predicated region
        $region34: #{mlp_forward.1} parent=32 // pred_check
          _
        $region35: #{mlp_forward.1} parent=32 // pred_check_branch
          %1260 = sbr.rel target = $region37
        $region36: #{mlp_forward.1} parent=32 // pred_region
          // Predicated region
          $region49: #{mlp_forward.1} parent=36 // pred_check
            _
          $region50: #{mlp_forward.1} parent=36 // pred_check_branch
            %1275 = sbr.rel (0) target = $region52
          $region51: #{mlp_forward.1} parent=36 // pred_region
            loop: start=0, step=1, limit=1
            $region53: #{mlp_forward.1} parent=51 // loop_pre_header
              _
            $region54: #{mlp_forward.1} parent=51 // loop_header
              %s1278 = sphi 0, %s1282
              %p1279 = scmp.ge.s32.totalorder %s1278, 1
              %s1283 = sphi [#allocation4], [#allocation4]
              %s1284 = sphi %s5, %s5
            $region55: #{mlp_forward.1} parent=51 // loop_header_branch
              %1281 = sbr.rel (%p1279) target = $region59
            $region56: #{mlp_forward.1} parent=51 // loop_body
              %v1285 = vld [vmem:[%s1283] sm:$0x1]
              %1286 = vst [vmem:[%s1284] sm:$0x1] %v1285
            $region57: #{mlp_forward.1} parent=51 // loop_footer
              %s1282 = sadd.s32 1, %s1278
            $region58: #{mlp_forward.1} parent=51 // loop_footer_branch
              %1277 = sbr.rel target = $region54
            $region59: #{mlp_forward.1} parent=51 // loop_exit
              _
          $region52: #{mlp_forward.1} parent=36 // pred_fallthru
            _
        $region37: #{mlp_forward.1} parent=32 // pred_fallthru
          _
        // Predicated region
        $region38: #{mlp_forward.1} parent=32 // pred_check
          _
        $region39: #{mlp_forward.1} parent=32 // pred_check_branch
          %1262 = sbr.rel (0) target = $region41
        $region40: #{mlp_forward.1} parent=32 // pred_region
          loop: start=0, step=1, limit=1
          $region42: #{mlp_forward.1} parent=40 // loop_pre_header
            _
          $region43: #{mlp_forward.1} parent=40 // loop_header
            %s1265 = sphi 0, %s1269
            %p1266 = scmp.ge.s32.totalorder %s1265, 1
            %s1270 = sphi [#allocation4], [#allocation4]
            %s1271 = sphi %s5, %s5
          $region44: #{mlp_forward.1} parent=40 // loop_header_branch
            %1268 = sbr.rel (%p1266) target = $region48
          $region45: #{mlp_forward.1} parent=40 // loop_body
            %v1272 = vld [vmem:[%s1270] sm:$0x1]
            %1273 = vst [vmem:[%s1271] sm:$0x1] %v1272
          $region46: #{mlp_forward.1} parent=40 // loop_footer
            %s1269 = sadd.s32 1, %s1265
          $region47: #{mlp_forward.1} parent=40 // loop_footer_branch
            %1264 = sbr.rel target = $region43
          $region48: #{mlp_forward.1} parent=40 // loop_exit
            _
        $region41: #{mlp_forward.1} parent=32 // pred_fallthru
          _
      $region33: #{mlp_forward.1} parent=28 // pred_fallthru
        _
      %1287 = vnop
    $region29: #{mlp_forward.1} parent=1 // pred_fallthru
      _
    // Predicated region
    $region60: #{mlp_forward.1} parent=1 // pred_check
      _
    $region61: #{mlp_forward.1} parent=1 // pred_check_branch
      %1289 = sbr.rel (0) target = $region63
    $region62: #{mlp_forward.1} parent=1 // pred_region
      _
    $region63: #{mlp_forward.1} parent=1 // pred_fallthru
      _
    %1290 = vsyncpa [#allocation3], 1

</llo_original>
